<compile_context>
chip_gen: v5e
topology: v5e:2x2
jax: 0.10.0
libtpu: 0.0.40
codegen_flags: <defaults>
</compile_context>

<pallas_src>
import functools

import jax
import jax.numpy as jnp
import numpy as np
from jax.experimental import pallas as pl
from jax.experimental.pallas import tpu as pltpu


def _round_up(x, m):
    return ((x + m - 1) // m) * m


def _vmem_capacity_bytes():
    try:
        return int(pltpu.get_tpu_info().vmem_capacity_bytes)
    except Exception:
        return 64 * 1024 * 1024          # conservative: v7x per-TensorCore VMEM


# --------------------------------------------------------------------------
# Kernel
# --------------------------------------------------------------------------
def recon_kernel(x_ref, wb_ref, bb_ref, wh_ref, bh_ref, out_ref, acc_ref, *,
                 tn, c, hw, thw, inv_hw, needs_mask):
    s = pl.program_id(1)                      # spatial (reduction) axis, last
    rows = tn * c
    cw = 128 if thw >= 128 else thw           # lane-dense chunk width
    n_chunks = thw // cw

    @pl.when(s == 0)
    def _init():
        acc_ref[...] = jnp.zeros_like(acc_ref)

    if needs_mask:
        # Hoisted once per step (JAX does not CSE broadcast_in_dim).
        lane = jax.lax.broadcasted_iota(jnp.int32, (rows, cw), 1)

    # Hot loop: aligned 128-wide static slices + pure VPU adds into a
    # lane-dense (rows, 128) accumulator.  No XLU, no masked narrow stores.
    psum = None
    for j in range(n_chunks):
        chunk = x_ref[:, j * cw:(j + 1) * cw].astype(jnp.float32)
        if needs_mask:
            col = s * thw + j * cw + lane
            chunk = jnp.where(col < hw, chunk, 0.0)
        psum = chunk if psum is None else psum + chunk
    acc_ref[...] += psum

    @pl.when(s == pl.num_programs(1) - 1)
    def _finalize():
        # One cross-lane reduce + tiny relayout per batch tile (amortized).
        pooled = (jnp.sum(acc_ref[...], axis=-1, keepdims=True)
                  .reshape(tn, c) * inv_hw)                      # (TN, C) f32

        # Backbone stand-in: linear + ReLU (bf16 MXU, f32 accumulation).
        feat = jnp.dot(pooled.astype(wb_ref.dtype), wb_ref[...],
                       preferred_element_type=jnp.float32) + bb_ref[...]
        feat = jnp.maximum(feat, 0.0)                            # (TN, C_back)

        # Head: the 7 concatenated conv1x1 on a 1x1 map == one matmul against
        # the concatenated weight, zero-padded to a lane-dense 128-wide out.
        out = jnp.dot(feat.astype(wh_ref.dtype), wh_ref[...],
                      preferred_element_type=jnp.float32) + bh_ref[...]
        out_ref[...] = out.astype(out_ref.dtype)                 # (TN, FC_PAD)


# --------------------------------------------------------------------------
# Tiling helpers
# --------------------------------------------------------------------------
def _choose_batch_tile(N, C, batch_tile):
    """Whole batches per block; row blocks must be 8-sublane aligned (f32) or
    the full extent.  Prefer >= 2 batch tiles (v7x megacore) when possible."""
    tn = max(1, min(batch_tile, N))
    if tn == N:
        half = (N + 1) // 2
        if half < N and half % 8 == 0:       # output rows & image rows aligned
            return half
        return N                              # single full-extent tile
    tn = max(8, (tn // 8) * 8)                # non-final blocks need alignment
    if tn >= N:
        tn = N
    return tn


def _choose_spatial_tile(HW, spatial_tile, rows_block, fixed_bytes, vmem_cap):
    if HW <= 128:
        return HW                             # full-extent narrow case
    thw = min(spatial_tile, HW)
    thw = max(128, (thw // 128) * 128)
    budget = int(0.55 * vmem_cap)             # leave headroom (v7x: 64 MiB)
    while (2 * rows_block * thw * 4 + fixed_bytes) > budget and thw >= 256:
        thw = max(128, ((thw // 2) // 128) * 128)
    return thw


# --------------------------------------------------------------------------
# Wrapper
# --------------------------------------------------------------------------
def get_coeffs(net_output, fc_dim_dict):
    id_d = fc_dim_dict['id_dims']
    exp_d = fc_dim_dict['exp_dims']
    tex_d = fc_dim_dict['tex_dims']
    i0 = id_d
    i1 = i0 + exp_d
    i2 = i1 + tex_d
    o = net_output
    return {
        'id': o[:, :i0],
        'exp': o[:, i0:i1],
        'tex': o[:, i1:i2],
        'angle': o[:, i2:i2 + 3],
        'gamma': o[:, i2 + 3:i2 + 3 + 27].reshape(-1, 3, 9),
        'trans': o[:, i2 + 3 + 27:],
    }


def recon_forward(x_nchw, params, fc_dim_dict, *,
                  batch_tile=32, spatial_tile=4096):
    N, C, H, W = x_nchw.shape
    HW = H * W
    wb, bb, wh, bh = params['wb'], params['bb'], params['wh'], params['bh']
    C_back = wb.shape[1]
    fc_dim = wh.shape[1]
    FC_PAD = _round_up(fc_dim, 128)                     # lane-dense head out

    # Weights (tiny): bf16 for MXU, f32 biases, head zero-padded to 128 wide.
    wb_b = wb.astype(jnp.bfloat16)
    bb_f = bb.astype(jnp.float32).reshape(1, C_back)
    wh_p = jnp.pad(wh, ((0, 0), (0, FC_PAD - fc_dim))).astype(jnp.bfloat16)
    bh_p = jnp.pad(bh, ((0, 0), (0, FC_PAD - fc_dim))
                   ).astype(jnp.float32).reshape(1, FC_PAD)

    # Image: NO cast, NO pad. Fold C into rows; lets XLA fuse the reshape into
    # the pallas_call input (allow_input_fusion) so there is no extra HBM pass.
    x2d = x_nchw.reshape(N * C, HW)

    # ---- tiling / VMEM budget ----------------------------------------------
    tn = _choose_batch_tile(N, C, batch_tile)
    rows_block = tn * C
    vmem_cap = _vmem_capacity_bytes()
    acc_lanes_est = 128 if HW >= 128 else HW
    weight_bytes = (wb_b.size * 2 + wh_p.size * 2 + bb_f.size * 4 + bh_p.size * 4)
    fixed_bytes = (2 * weight_bytes + 2 * tn * FC_PAD * 4
                   + rows_block * acc_lanes_est * 4 + (2 << 20))
    thw = _choose_spatial_tile(HW, spatial_tile, rows_block, fixed_bytes, vmem_cap)
    acc_lanes = 128 if thw >= 128 else thw
    needs_mask = (HW % thw) != 0
    grid = (pl.cdiv(N, tn), pl.cdiv(HW, thw))           # (parallel, arbitrary)

    img_block_bytes = rows_block * thw * x2d.dtype.itemsize
    vmem_limit = 2 * img_block_bytes + fixed_bytes + (4 << 20)
    vmem_limit = max(vmem_limit, 16 << 20)              # sane floor
    vmem_limit = min(vmem_limit, int(0.75 * vmem_cap))  # v7x: 64 MiB physical

    kernel = functools.partial(recon_kernel, tn=tn, c=C, hw=HW, thw=thw,
                               inv_hw=1.0 / HW, needs_mask=needs_mask)

    flops = N * C * HW + 2 * N * (C * C_back + C_back * FC_PAD)
    bytes_accessed = x2d.size * x2d.dtype.itemsize + weight_bytes + N * FC_PAD * 4
    cost = pl.CostEstimate(flops=int(flops), transcendentals=0,
                           bytes_accessed=int(bytes_accessed))

    out_padded = pl.pallas_call(
        kernel,
        out_shape=jax.ShapeDtypeStruct((N, FC_PAD), jnp.float32),
        grid_spec=pltpu.PrefetchScalarGridSpec(
            num_scalar_prefetch=0,
            grid=grid,
            in_specs=[
                # image tile (TN*C, THW): dense minor dims, pipelined over grid
                pl.BlockSpec((rows_block, thw), lambda b, s: (b, s)),
                # weights/biases: constant block index -> resident, no re-DMA.
                # NOTE(review): once real ResNet-50 weights replace the
                # stand-in, mark these pipeline_mode=pl.Buffered(1) to reclaim
                # the double-buffer VMEM for larger image tiles.
                pl.BlockSpec(wb_b.shape, lambda b, s: (0, 0)),
                pl.BlockSpec(bb_f.shape, lambda b, s: (0, 0)),
                pl.BlockSpec(wh_p.shape, lambda b, s: (0, 0)),
                pl.BlockSpec(bh_p.shape, lambda b, s: (0, 0)),
            ],
            out_specs=pl.BlockSpec((tn, FC_PAD), lambda b, s: (b, 0)),
            scratch_shapes=[pltpu.VMEM((rows_block, acc_lanes), jnp.float32)],
        ),
        compiler_params=pltpu.CompilerParams(
            dimension_semantics=("parallel", "arbitrary"),
            vmem_limit_bytes=int(vmem_limit),
            allow_input_fusion=[True, False, False, False, False],
        ),
        cost_estimate=cost,
    )(x2d, wb_b, bb_f, wh_p, bh_p)

    net_output = out_padded[:, :fc_dim]
    return get_coeffs(net_output, fc_dim_dict)


# --------------------------------------------------------------------------
# Parameters / reference
# --------------------------------------------------------------------------
def make_params(key, c_in, c_back, fc_dim_dict):
    """Deterministic synthetic parameters (no checkpoint load)."""
    head_dims = [fc_dim_dict['id_dims'], fc_dim_dict['exp_dims'],
                 fc_dim_dict['tex_dims'], 3, 27, 2, 1]
    ks = jax.random.split(key, 2 + 2 * len(head_dims))
    wb = jax.random.normal(ks[0], (c_in, c_back), jnp.float32) * 0.1
    bb = jax.random.normal(ks[1], (1, c_back), jnp.float32) * 0.1
    # Per-final_layer conv1x1 weights (c_back -> d), concatenated along the
    # output-channel axis exactly as torch.cat(output, dim=1) does.
    whs, bhs = [], []
    for j, d in enumerate(head_dims):
        whs.append(jax.random.normal(ks[2 + 2 * j], (c_back, d), jnp.float32) * 0.1)
        bhs.append(jax.random.normal(ks[3 + 2 * j], (1, d), jnp.float32) * 0.1)
    wh = jnp.concatenate(whs, axis=1)
    bh = jnp.concatenate(bhs, axis=1)
    return {'wb': wb, 'bb': bb, 'wh': wh, 'bh': bh}


def reference_forward(x_nchw, params, fc_dim_dict):
    """Pure-JAX reference mirroring the kernel's f32-pool / bf16-matmul path."""
    N, C, H, W = x_nchw.shape
    HW = H * W
    pooled = jnp.sum(x_nchw.reshape(N, C, HW).astype(jnp.float32),
                     axis=-1) * (1.0 / HW)
    feat = jnp.dot(pooled.astype(jnp.bfloat16),
                   params['wb'].astype(jnp.bfloat16),
                   preferred_element_type=jnp.float32) + params['bb']
    feat = jnp.maximum(feat, 0.0)
    o = jnp.dot(feat.astype(jnp.bfloat16),
                params['wh'].astype(jnp.bfloat16),
                preferred_element_type=jnp.float32) + params['bh']
    return get_coeffs(o, fc_dim_dict)


# --------------------------------------------------------------------------
if __name__ == "__main__":
    # Small shapes consistent with the module's forward.
    N, C_in, H, W = 2, 4, 16, 16
    C_back = 32                                   # backbone_last_dim (stand-in)
    fc_dim_dict = {'id_dims': 16, 'exp_dims': 8, 'tex_dims': 16}
    fc_dim = (fc_dim_dict['id_dims'] + fc_dim_dict['exp_dims'] +
              fc_dim_dict['tex_dims'] + 3 + 27 + 2 + 1)   # = 73

    key = jax.random.PRNGKey(0)
    kx, kp = jax.random.split(key)
    x = jax.random.normal(kx, (N, C_in, H, W), jnp.float32)
    params = make_params(kp, C_in, C_back, fc_dim_dict)

    # spatial_tile=128 so the multi-step accumulation path is exercised
    # (H*W = 256 -> 2 spatial grid steps).  jit lets the image reshape fuse
    # into the pallas_call input (allow_input_fusion).
    recon_fn = jax.jit(functools.partial(recon_forward,
                                         fc_dim_dict=fc_dim_dict,
                                         batch_tile=2, spatial_tile=128))
    coeffs = recon_fn(x, params)
    coeffs = jax.tree_util.tree_map(jax.block_until_ready, coeffs)

    # Sanity checks against the pure-JAX reference (same bf16 rounding).
    ref = reference_forward(x, params, fc_dim_dict)
    for k in ('id', 'exp', 'tex', 'angle', 'gamma', 'trans'):
        np.testing.assert_allclose(np.asarray(coeffs[k]), np.asarray(ref[k]),
                                   rtol=1e-3, atol=1e-3)
    assert coeffs['id'].shape == (N, fc_dim_dict['id_dims'])
    assert coeffs['gamma'].shape == (N, 3, 9)
    assert coeffs['trans'].shape == (N, 2 + 1)

    print("KERNEL_OK")
</pallas_src>

<mosaic_0001>
module attributes {stable_mosaic.version = 11 : i64} {
  func.func @recon_kernel(%arg0: i32, %arg1: i32, %arg2: memref<8x128xf32, #tpu.memory_space<vmem>>, %arg3: memref<4x32xbf16, #tpu.memory_space<vmem>>, %arg4: memref<1x32xf32, #tpu.memory_space<vmem>>, %arg5: memref<32x128xbf16, #tpu.memory_space<vmem>>, %arg6: memref<1x128xf32, #tpu.memory_space<vmem>>, %arg7: memref<2x128xf32, #tpu.memory_space<vmem>>, %arg8: memref<8x128xf32, #tpu.memory_space<vmem>>) attributes {dimension_semantics = [#tpu.dimension_semantics<parallel>, #tpu.dimension_semantics<arbitrary>], iteration_bounds = array<i64: 1, 2>, scalar_prefetch = 0 : i64, scratch_operands = 1 : i64, tpu.core_type = #tpu.core_type<tc>, window_params = [{transform_indices = @transform_0, window_bounds = array<i64: 8, 128>}, {pipeline_mode = #tpu.pipeline_mode<synchronous>, transform_indices = @transform_1, window_bounds = array<i64: 4, 32>}, {pipeline_mode = #tpu.pipeline_mode<synchronous>, transform_indices = @transform_2, window_bounds = array<i64: 1, 32>}, {pipeline_mode = #tpu.pipeline_mode<synchronous>, transform_indices = @transform_3, window_bounds = array<i64: 32, 128>}, {pipeline_mode = #tpu.pipeline_mode<synchronous>, transform_indices = @transform_4, window_bounds = array<i64: 1, 128>}, {transform_indices = @transform_5, window_bounds = array<i64: 2, 128>}]} {
    %c0_i32 = arith.constant 0 : i32
    %0 = arith.cmpi eq, %arg1, %c0_i32 : i32
    %1 = arith.extui %0 : i1 to i32
    %c0_i32_0 = arith.constant 0 : i32
    %2 = arith.cmpi ne, %1, %c0_i32_0 : i32
    scf.if %2 {
      %cst = arith.constant 0.000000e+00 : f32
      %10 = vector.broadcast %cst : f32 to vector<8x128xf32>
      %c0_7 = arith.constant 0 : index
      %c0_8 = arith.constant 0 : index
      %11 = vector.load %arg8[%c0_7, %c0_8] : memref<8x128xf32, #tpu.memory_space<vmem>>, vector<8x128xf32>
      tpu.vector_store %arg8[%c0_7, %c0_8], %10 {strides = array<i32>} : memref<8x128xf32, #tpu.memory_space<vmem>>, vector<8x128xf32>,
    } else {
    }
    %c0 = arith.constant 0 : index
    %c0_1 = arith.constant 0 : index
    %3 = vector.load %arg2[%c0, %c0_1] : memref<8x128xf32, #tpu.memory_space<vmem>>, vector<8x128xf32>
    %c0_2 = arith.constant 0 : index
    %c0_3 = arith.constant 0 : index
    %4 = vector.load %arg8[%c0_2, %c0_3] : memref<8x128xf32, #tpu.memory_space<vmem>>, vector<8x128xf32>
    %5 = arith.addf %4, %3 : vector<8x128xf32>
    %c0_4 = arith.constant 0 : index
    %c0_5 = arith.constant 0 : index
    %6 = vector.load %arg8[%c0_4, %c0_5] : memref<8x128xf32, #tpu.memory_space<vmem>>, vector<8x128xf32>
    tpu.vector_store %arg8[%c0_4, %c0_5], %5 {strides = array<i32>} : memref<8x128xf32, #tpu.memory_space<vmem>>, vector<8x128xf32>,
    %c1_i32 = arith.constant 1 : i32
    %7 = arith.cmpi eq, %arg1, %c1_i32 : i32
    %8 = arith.extui %7 : i1 to i32
    %c0_i32_6 = arith.constant 0 : i32
    %9 = arith.cmpi ne, %8, %c0_i32_6 : i32
    scf.if %9 {
      %c0_7 = arith.constant 0 : index
      %c0_8 = arith.constant 0 : index
      %10 = vector.load %arg8[%c0_7, %c0_8] : memref<8x128xf32, #tpu.memory_space<vmem>>, vector<8x128xf32>
      %cst = arith.constant dense<0.000000e+00> : vector<8xf32>
      %11 = vector.multi_reduction <add>, %10, %cst [1] : vector<8x128xf32> to vector<8xf32>
      %12 = vector.shape_cast %11 : vector<8xf32> to vector<8x1xf32>
      %13 = vector.shape_cast %12 : vector<8x1xf32> to vector<2x4xf32>
      %cst_9 = arith.constant 3.906250e-03 : f32
      %14 = vector.broadcast %cst_9 : f32 to vector<2x4xf32>
      %15 = arith.mulf %13, %14 : vector<2x4xf32>
      %16 = arith.truncf %15 : vector<2x4xf32> to vector<2x4xbf16>
      %c0_10 = arith.constant 0 : index
      %c0_11 = arith.constant 0 : index
      %17 = vector.load %arg3[%c0_10, %c0_11] : memref<4x32xbf16, #tpu.memory_space<vmem>>, vector<4x32xbf16>
      %cst_12 = arith.constant dense<0.000000e+00> : vector<2x32xf32>
      %18 = tpu.matmul %16, %17, %cst_12 {dimension_numbers = #tpu.dot_dimension_numbers<[1], [0], [0], [1], [0, 0, 1, 1], [], []>} : vector<2x4xbf16>, vector<4x32xbf16>, vector<2x32xf32> -> vector<2x32xf32>
      %c0_13 = arith.constant 0 : index
      %c0_14 = arith.constant 0 : index
      %19 = vector.load %arg4[%c0_13, %c0_14] : memref<1x32xf32, #tpu.memory_space<vmem>>, vector<1x32xf32>
      %20 = vector.broadcast %19 : vector<1x32xf32> to vector<2x32xf32>
      %21 = arith.addf %18, %20 : vector<2x32xf32>
      %cst_15 = arith.constant 0.000000e+00 : f32
      %22 = vector.broadcast %cst_15 : f32 to vector<2x32xf32>
      %23 = arith.maximumf %21, %22 : vector<2x32xf32>
      %24 = arith.truncf %23 : vector<2x32xf32> to vector<2x32xbf16>
      %c0_16 = arith.constant 0 : index
      %c0_17 = arith.constant 0 : index
      %25 = vector.load %arg5[%c0_16, %c0_17] : memref<32x128xbf16, #tpu.memory_space<vmem>>, vector<32x128xbf16>
      %cst_18 = arith.constant dense<0.000000e+00> : vector<2x128xf32>
      %26 = tpu.matmul %24, %25, %cst_18 {dimension_numbers = #tpu.dot_dimension_numbers<[1], [0], [0], [1], [0, 0, 1, 1], [], []>} : vector<2x32xbf16>, vector<32x128xbf16>, vector<2x128xf32> -> vector<2x128xf32>
      %c0_19 = arith.constant 0 : index
      %c0_20 = arith.constant 0 : index
      %27 = vector.load %arg6[%c0_19, %c0_20] : memref<1x128xf32, #tpu.memory_space<vmem>>, vector<1x128xf32>
      %28 = vector.broadcast %27 : vector<1x128xf32> to vector<2x128xf32>
      %29 = arith.addf %26, %28 : vector<2x128xf32>
      %c0_21 = arith.constant 0 : index
      %c0_22 = arith.constant 0 : index
      %30 = vector.load %arg7[%c0_21, %c0_22] : memref<2x128xf32, #tpu.memory_space<vmem>>, vector<2x128xf32>
      tpu.vector_store %arg7[%c0_21, %c0_22], %29 {strides = array<i32>} : memref<2x128xf32, #tpu.memory_space<vmem>>, vector<2x128xf32>,
    } else {
    }
    return
  }
  func.func @transform_0(%arg0: i32, %arg1: i32) -> (i32, i32) {
    %c0_i32 = arith.constant 0 : i32
    return %arg0, %arg1 : i32, i32
  }
  func.func @transform_1(%arg0: i32, %arg1: i32) -> (i32, i32) {
    %c0_i32 = arith.constant 0 : i32
    %c0_i32_0 = arith.constant 0 : i32
    %c0_i32_1 = arith.constant 0 : i32
    return %c0_i32, %c0_i32_0 : i32, i32
  }
  func.func @transform_2(%arg0: i32, %arg1: i32) -> (i32, i32) {
    %c0_i32 = arith.constant 0 : i32
    %c0_i32_0 = arith.constant 0 : i32
    %c0_i32_1 = arith.constant 0 : i32
    return %c0_i32, %c0_i32_0 : i32, i32
  }
  func.func @transform_3(%arg0: i32, %arg1: i32) -> (i32, i32) {
    %c0_i32 = arith.constant 0 : i32
    %c0_i32_0 = arith.constant 0 : i32
    %c0_i32_1 = arith.constant 0 : i32
    return %c0_i32, %c0_i32_0 : i32, i32
  }
  func.func @transform_4(%arg0: i32, %arg1: i32) -> (i32, i32) {
    %c0_i32 = arith.constant 0 : i32
    %c0_i32_0 = arith.constant 0 : i32
    %c0_i32_1 = arith.constant 0 : i32
    return %c0_i32, %c0_i32_0 : i32, i32
  }
  func.func @transform_5(%arg0: i32, %arg1: i32) -> (i32, i32) {
    %c0_i32 = arith.constant 0 : i32
    %c0_i32_0 = arith.constant 0 : i32
    return %arg0, %c0_i32 : i32, i32
  }
}

</mosaic_0001>

<llo_original>
// kernel: recon_forward.1
$region0: #{recon_forward.1}
  #allocation0 [shape = 'u32[]', space=smem, size = 0x4, offset = 0x4, fixed_abs, tag = 'smem constant byte address 0x4 - core index']
  #allocation1 [shape = 'u32[72,128]{1,0:T(1,128)}', space=vmem, size = 0x9000, scoped, tag = 'internal scratch']
  #allocation2 [shape = 'f32[8,128]{1,0:T(8,128)}', space=vmem, size = 0x1000, scoped, tag = 'scratch operand']
  %s0 = inlined_call_operand.vmem [shape: f32[8,256], index: 0, kind: input, shape index: {}]
  %s1 = inlined_call_operand.vmem [shape: bf16[4,32], index: 1, kind: input, shape index: {}]
  %s2 = inlined_call_operand.vmem [shape: f32[1,32], index: 2, kind: input, shape index: {}]
  %s3 = inlined_call_operand.vmem [shape: bf16[32,128], index: 3, kind: input, shape index: {}]
  %s4 = inlined_call_operand.vmem [shape: f32[1,128], index: 4, kind: input, shape index: {}]
  %s5 = inlined_call_operand.vmem [shape: f32[2,128], index: 5, kind: output, shape index: {}]
  %s6 = sld [smem:[#allocation0]]
  $region61: #{recon_forward.1} parent=0
    _
  %s8 = ssub.s32 1, %s6
  %s9 = scalar_select 0, %s8, %s6
  loop: start=0, step=1, limit=4
  $region2: #{recon_forward.1} parent=0 // loop_pre_header
    _
  $region3: #{recon_forward.1} parent=0 // loop_header
    %s11 = sphi 0, %s15
    %p12 = scmp.ge.s32.totalorder %s11, 4
    %s18 = sphi 0, %s30
    %s19 = sphi 0, %s26
    %s20 = sphi 0, %s18
    %s21 = sphi 0, %s19
    %s22 = sphi 0, %s20
    %s23 = sphi 0, %s21
    %s35 = sphi 0, %s37
    %s38 = sphi 0, %s35
    %s39 = sphi 0, %s38
    %s55 = sphi 0, %s39
    %s59 = sphi 0, %s59
    %s61 = sphi 0, %s59
    %s62 = sphi 0, %s61
    %s76 = sphi 0, %s62
    %s80 = sphi 0, %s80
    %s82 = sphi 0, %s80
    %s83 = sphi 0, %s82
    %s97 = sphi 0, %s83
    %s101 = sphi 0, %s101
    %s103 = sphi 0, %s101
    %s104 = sphi 0, %s103
    %s118 = sphi 0, %s104
    %s122 = sphi 0, %s122
    %s124 = sphi 0, %s122
    %s125 = sphi 0, %s124
    %s139 = sphi 0, %s125
    %s145 = sphi 0, %s147
    %s148 = sphi 0, %s145
    %s149 = sphi 0, %s148
    %s165 = sphi 0, %s149
  $region4: #{recon_forward.1} parent=0 // loop_header_branch
    %14 = sbr.rel (%p12) target = $region8
  $region5: #{recon_forward.1} parent=0 // loop_body
    %s16 = ssub.s32 %s11, 1
    %s17 = ssub.s32 %s11, 2
    %s24 = sadd.s32 1, %s19
    %p25 = scmp.ge.s32.totalorder %s24, 2
    %s26 = scalar_select %p25, 0, %s24
    %s27 = sadd.s32 1, %s18
    %s28 = scalar_select %p25, %s27, %s18
    %p29 = scmp.ge.s32.totalorder %s28, 1
    %s30 = scalar_select %p29, 0, %s28
    %s31 = ssub.s32 %s18, %s30
    %s32 = ssub.s32 %s19, %s26
    %s33 = sor.u32 %s31, %s32
    %p34 = scmp.eq.s32.totalorder %s33, 0
    %s36 = sadd.s32 %s35, 1
    %s37 = scalar_select %p34, %s35, %s36
    %p40 = pneg %p34
    %p41 = scmp.eq.s32.totalorder %s11, 1
    %p42 = por %p40, %p41
    %p43 = scmp.ne.s32.totalorder %s35, %s38
    %p44 = scmp.eq.s32.totalorder %s11, 0
    %p45 = por %p43, %p44
    %p46 = scmp.ne.s32.totalorder %s35, %s38
    %p47 = scmp.eq.s32.totalorder %s16, 1
    %p48 = por %p46, %p47
    %p49 = scmp.ne.s32.totalorder %s38, %s39
    %p50 = scmp.eq.s32.totalorder %s16, 0
    %p51 = por %p49, %p50
    %p52 = scmp.ne.s32.totalorder %s38, %s39
    %p53 = scmp.eq.s32.totalorder %s17, 1
    %p54 = por %p52, %p53
    %p56 = scmp.ne.s32.totalorder %s39, %s55
    %p57 = scmp.eq.s32.totalorder %s17, 0
    %p58 = por %p56, %p57
    %s60 = sadd.s32 %s59, 1
    %p63 = scmp.eq.s32.totalorder %s11, 1
    %p64 = scmp.ne.s32.totalorder %s59, %s61
    %p65 = scmp.eq.s32.totalorder %s11, 0
    %p66 = por %p64, %p65
    %p67 = scmp.ne.s32.totalorder %s59, %s61
    %p68 = scmp.eq.s32.totalorder %s16, 1
    %p69 = por %p67, %p68
    %p70 = scmp.ne.s32.totalorder %s61, %s62
    %p71 = scmp.eq.s32.totalorder %s16, 0
    %p72 = por %p70, %p71
    %p73 = scmp.ne.s32.totalorder %s61, %s62
    %p74 = scmp.eq.s32.totalorder %s17, 1
    %p75 = por %p73, %p74
    %p77 = scmp.ne.s32.totalorder %s62, %s76
    %p78 = scmp.eq.s32.totalorder %s17, 0
    %p79 = por %p77, %p78
    %s81 = sadd.s32 %s80, 1
    %p84 = scmp.eq.s32.totalorder %s11, 1
    %p85 = scmp.ne.s32.totalorder %s80, %s82
    %p86 = scmp.eq.s32.totalorder %s11, 0
    %p87 = por %p85, %p86
    %p88 = scmp.ne.s32.totalorder %s80, %s82
    %p89 = scmp.eq.s32.totalorder %s16, 1
    %p90 = por %p88, %p89
    %p91 = scmp.ne.s32.totalorder %s82, %s83
    %p92 = scmp.eq.s32.totalorder %s16, 0
    %p93 = por %p91, %p92
    %p94 = scmp.ne.s32.totalorder %s82, %s83
    %p95 = scmp.eq.s32.totalorder %s17, 1
    %p96 = por %p94, %p95
    %p98 = scmp.ne.s32.totalorder %s83, %s97
    %p99 = scmp.eq.s32.totalorder %s17, 0
    %p100 = por %p98, %p99
    %s102 = sadd.s32 %s101, 1
    %p105 = scmp.eq.s32.totalorder %s11, 1
    %p106 = scmp.ne.s32.totalorder %s101, %s103
    %p107 = scmp.eq.s32.totalorder %s11, 0
    %p108 = por %p106, %p107
    %p109 = scmp.ne.s32.totalorder %s101, %s103
    %p110 = scmp.eq.s32.totalorder %s16, 1
    %p111 = por %p109, %p110
    %p112 = scmp.ne.s32.totalorder %s103, %s104
    %p113 = scmp.eq.s32.totalorder %s16, 0
    %p114 = por %p112, %p113
    %p115 = scmp.ne.s32.totalorder %s103, %s104
    %p116 = scmp.eq.s32.totalorder %s17, 1
    %p117 = por %p115, %p116
    %p119 = scmp.ne.s32.totalorder %s104, %s118
    %p120 = scmp.eq.s32.totalorder %s17, 0
    %p121 = por %p119, %p120
    %s123 = sadd.s32 %s122, 1
    %p126 = scmp.eq.s32.totalorder %s11, 1
    %p127 = scmp.ne.s32.totalorder %s122, %s124
    %p128 = scmp.eq.s32.totalorder %s11, 0
    %p129 = por %p127, %p128
    %p130 = scmp.ne.s32.totalorder %s122, %s124
    %p131 = scmp.eq.s32.totalorder %s16, 1
    %p132 = por %p130, %p131
    %p133 = scmp.ne.s32.totalorder %s124, %s125
    %p134 = scmp.eq.s32.totalorder %s16, 0
    %p135 = por %p133, %p134
    %p136 = scmp.ne.s32.totalorder %s124, %s125
    %p137 = scmp.eq.s32.totalorder %s17, 1
    %p138 = por %p136, %p137
    %p140 = scmp.ne.s32.totalorder %s125, %s139
    %p141 = scmp.eq.s32.totalorder %s17, 0
    %p142 = por %p140, %p141
    %s143 = ssub.s32 %s18, %s30
    %p144 = scmp.eq.s32.totalorder %s143, 0
    %s146 = sadd.s32 %s145, 1
    %s147 = scalar_select %p144, %s145, %s146
    %p150 = pneg %p144
    %p151 = scmp.eq.s32.totalorder %s11, 1
    %p152 = por %p150, %p151
    %p153 = scmp.ne.s32.totalorder %s145, %s148
    %p154 = scmp.eq.s32.totalorder %s11, 0
    %p155 = por %p153, %p154
    %p156 = scmp.ne.s32.totalorder %s145, %s148
    %p157 = scmp.eq.s32.totalorder %s16, 1
    %p158 = por %p156, %p157
    %p159 = scmp.ne.s32.totalorder %s148, %s149
    %p160 = scmp.eq.s32.totalorder %s16, 0
    %p161 = por %p159, %p160
    %p162 = scmp.ne.s32.totalorder %s148, %s149
    %p163 = scmp.eq.s32.totalorder %s17, 1
    %p164 = por %p162, %p163
    %p166 = scmp.ne.s32.totalorder %s149, %s165
    %p167 = scmp.eq.s32.totalorder %s17, 0
    %p168 = por %p166, %p167
    %p169 = scmp.le.s32.totalorder 1, %s11
    %p170 = scmp.lt.s32.totalorder %s11, 3
    %p171 = pnand %p169, %p170
    %p172 = pneg %p171
    // Predicated region
    $region9: #{recon_forward.1} parent=5 // pred_check
      _
    $region10: #{recon_forward.1} parent=5 // pred_check_branch
      %174 = sbr.rel (%p171) target = $region12
    $region11: #{recon_forward.1} parent=5 // pred_region
      %s175 = ssub.s32 %s11, 1
      // Predicated region
      $region13: #{recon_forward.1} parent=11 // pred_check
        %p176 = pneg %p72
      $region14: #{recon_forward.1} parent=11 // pred_check_branch
        %178 = sbr.rel (%p176) target = $region16
      $region15: #{recon_forward.1} parent=11 // pred_region
        _
      $region16: #{recon_forward.1} parent=11 // pred_fallthru
        _
      // Predicated region
      $region17: #{recon_forward.1} parent=11 // pred_check
        %p179 = pneg %p93
      $region18: #{recon_forward.1} parent=11 // pred_check_branch
        %181 = sbr.rel (%p179) target = $region20
      $region19: #{recon_forward.1} parent=11 // pred_region
        _
      $region20: #{recon_forward.1} parent=11 // pred_fallthru
        _
      // Predicated region
      $region21: #{recon_forward.1} parent=11 // pred_check
        %p182 = pneg %p114
      $region22: #{recon_forward.1} parent=11 // pred_check_branch
        %184 = sbr.rel (%p182) target = $region24
      $region23: #{recon_forward.1} parent=11 // pred_region
        _
      $region24: #{recon_forward.1} parent=11 // pred_fallthru
        _
      // Predicated region
      $region25: #{recon_forward.1} parent=11 // pred_check
        %p185 = pneg %p135
      $region26: #{recon_forward.1} parent=11 // pred_check_branch
        %187 = sbr.rel (%p185) target = $region28
      $region27: #{recon_forward.1} parent=11 // pred_region
        _
      $region28: #{recon_forward.1} parent=11 // pred_fallthru
        _
    $region12: #{recon_forward.1} parent=5 // pred_fallthru
      _
    %p188 = scmp.lt.s32.totalorder %s11, 2
    // Predicated region
    $region29: #{recon_forward.1} parent=5 // pred_check
      %p189 = pneg %p188
    $region30: #{recon_forward.1} parent=5 // pred_check_branch
      %191 = sbr.rel (%p189) target = $region32
    $region31: #{recon_forward.1} parent=5 // pred_region
      // Predicated region
      $region33: #{recon_forward.1} parent=31 // pred_check
        %p192 = pneg %p45
      $region34: #{recon_forward.1} parent=31 // pred_check_branch
        %194 = sbr.rel (%p192) target = $region36
      $region35: #{recon_forward.1} parent=31 // pred_region
        %p195 = scmp.lt.s32.totalorder %s18, 0
        %s196 = scalar_select %p195, %s18, 0
        %p197 = scmp.lt.s32.totalorder %s19, 1
        %s198 = scalar_select %p197, %s19, 1
        %s199 = smul.addr %s196, 2
        %s200 = sadd.s32 %s198, %s199
        %s201 = smul.addr %s200, 8
        %s202 = scalar_lea.vmem %s0, %s201
      $region36: #{recon_forward.1} parent=31 // pred_fallthru
        _
    $region32: #{recon_forward.1} parent=5 // pred_fallthru
      _
    %p203 = scmp.le.s32.totalorder 1, %s11
    %p204 = scmp.lt.s32.totalorder %s11, 3
    %p205 = pnand %p203, %p204
    %p206 = pneg %p205
    // Predicated region
    $region37: #{recon_forward.1} parent=5 // pred_check
      _
    $region38: #{recon_forward.1} parent=5 // pred_check_branch
      %208 = sbr.rel (%p205) target = $region40
    $region39: #{recon_forward.1} parent=5 // pred_region
      %s209 = ssub.s32 %s11, 1
      %p210 = scmp.lt.s32.totalorder %s20, 0
      %s211 = scalar_select %p210, %s20, 0
      %p212 = scmp.lt.s32.totalorder %s21, 1
      %s213 = scalar_select %p212, %s21, 1
      %s214 = smul.addr %s211, 2
      %s215 = sadd.s32 %s213, %s214
      %s216 = smul.addr %s215, 8
      %s217 = scalar_lea.vmem %s0, %s216
      %p218 = pneg %p51
      %p219 = pneg %p48
      %p220 = pneg %p72
      %p221 = pneg %p69
      %p222 = pneg %p93
      %p223 = pneg %p90
      %p224 = pneg %p114
      %p225 = pneg %p111
      %p226 = pneg %p135
      %p227 = pneg %p132
      %p228 = pneg %p161
      %p229 = pneg %p158
      %p230 = scmp.lt.s32.totalorder %s20, 0
      %s231 = scalar_select %p230, %s20, 0
      %s232 = smul.addr %s231, 2
      %s233 = scalar_lea.vmem %s5, %s232
      %p234 = scmp.lt.s32.totalorder %s20, 0
      %s235 = scalar_select %p234, %s20, 0
      %p236 = scmp.lt.s32.totalorder %s21, 1
      %s237 = scalar_select %p236, %s21, 1
      %s238 = smul.addr %s235, 2
      %s239 = sadd.s32 %s237, %s238
      %s240 = smul.addr %s239, 8
      %s241 = scalar_lea.vmem %s0, %s240
      %p242 = scmp.lt.s32.totalorder %s20, 0
      %s243 = scalar_select %p242, %s20, 0
      %s244 = smul.addr %s243, 2
      %s245 = scalar_lea.vmem %s5, %s244
      %p247 = scmp.eq.s32.totalorder %s21, 0
      // Predicated region
      $region41: #{recon_forward.1} parent=39 // pred_check
        %p248 = pneg %p247
      $region42: #{recon_forward.1} parent=39 // pred_check_branch
        %250 = sbr.rel (%p248) target = $region44
      $region43: #{recon_forward.1} parent=39 // pred_region
        %251 = vst [vmem:[#allocation2] sm:$0xff] 0.0
      $region44: #{recon_forward.1} parent=39 // pred_fallthru
        _
      %v252 = vld [vmem:[%s241] sm:$0xff]
      %v253 = vld [vmem:[#allocation2] sm:$0xff]
      %v254 = vadd.f32 %v253, %v252
      %255 = vst [vmem:[#allocation2] sm:$0xff] %v254
      %p256 = scmp.eq.s32.totalorder %s21, 1
      // Predicated region
      $region45: #{recon_forward.1} parent=39 // pred_check
        %p257 = pneg %p256
      $region46: #{recon_forward.1} parent=39 // pred_check_branch
        %259 = sbr.rel (%p257) target = $region48
      $region47: #{recon_forward.1} parent=39 // pred_region
        %v260 = vld [vmem:[#allocation2] sm:$0xff]
        %261 = vadd.xlane.f32.xlu0 %v260
        %v262 = vpop.xlane.xlu0 %261
        %v265 = vunpack.c.l.s4 839922192
        %v266 = vunpack.c.0.s8 %v265
        %v267 = vperm.slane %v262, %v266
        %v269 = vunpack.c.l.s4 1985246804
        %v270 = vunpack.c.0.s8 %v269
        %v271 = vperm.slane %v262, %v270
        %v274 = vmul.f32 %v267, 0.00390625
        %v275 = vmul.f32 %v271, 0.00390625
        %v276 = vpack.c.bf16 %v274, %v274
        %v277 = vpack.c.bf16 %v275, %v275
        %v278 = vld [vmem:[%s1] sm:$0x3]
        %v279 = vld [vmem:[%s2] sm:$0x1]
        %v281 = vperm.slane %v279, 0
        %v285 = vunpack.c.l.b16 %v276
        %v286 = vunpack.c.l.b16 %v277
        %v287 = vlaneseq
        %v288 = vand.u32 %v287, 127
        %v289 = vperm.slane %v285, %v288
        %v290 = vperm.slane %v286, %v288
        %vm291 = vcmask 1041409
        %v292 = vsel %vm291, %v290, %v289
        %v293 = vpack.c.b16 %v292, %v292
        %vm294 = vcmask 31744
        %v296 = vsel %vm294, %v293, 0
        %vm298 = vcmask 1041408
        %v300 = vsel %vm298, %v278, 0
        %302 = vmatpush.bf16.msra.mxu0 0
        %303 = vmatpush.bf16.msra.mxu0 0
        %304 = vmatpush.bf16.msra.mxu0 0
        %305 = vmatpush.bf16.msra.mxu0 0
        %306 = vmatpush.bf16.msra.mxu0 0
        %307 = vmatpush.bf16.msra.mxu0 0
        %308 = vmatpush.bf16.msra.mxu0 0
        %309 = vmatpush.bf16.msra.mxu0 %v300
        %310 = vmatmul.bf16.gmra.mxu0 %v296
        %v311 = vpop.f32.mrf.mxu0
        %v312 = vadd.f32 %v281, %v311
        %v313 = vpop.f32.mrf.mxu0
        %314 = vdwg.mxu0
        %v315 = vmax.f32 %v312, 0.0
        %v316 = vpack.c.bf16 %v315, %v315
        %v317 = vld [vmem:[%s3] sm:$0xf]
        %v318 = vld [vmem:[%s3 + $0x4] sm:$0xf]
        %v319 = vld [vmem:[%s3 + $0x8] sm:$0xf]
        %v320 = vld [vmem:[%s3 + $0xc] sm:$0xf]
        %v321 = vld [vmem:[%s4] sm:$0x1]
        %v323 = vperm.slane %v321, 0
        %v329 = vunpack.c.l.b16 %v317
        %v330 = vunpack.c.l.b16 %v318
        %v331 = vunpack.c.l.b16 %v319
        %v332 = vunpack.c.l.b16 %v320
        %v333 = vpack.c.b16 %v330, %v329
        %v334 = vpack.c.b16 %v332, %v331
        %vm337 = vcmask 261120
        %v339 = vsel %vm337, %v316, 0
        %341 = vmatpush.bf16.msra.mxu0 0
        %342 = vmatpush.bf16.msra.mxu0 0
        %343 = vmatpush.bf16.msra.mxu0 0
        %344 = vmatpush.bf16.msra.mxu0 0
        %345 = vmatpush.bf16.msra.mxu0 0
        %346 = vmatpush.bf16.msra.mxu0 0
        %347 = vmatpush.bf16.msra.mxu0 %v334
        %348 = vmatpush.bf16.msra.mxu0 %v333
        %349 = vmatmul.bf16.gmra.mxu0 %v339
        %v350 = vpop.f32.mrf.mxu0
        %v351 = vadd.f32 %v323, %v350
        %v352 = vpop.f32.mrf.mxu0
        %353 = vdwg.mxu0
        %354 = vst [vmem:[%s245] sm:$0x3] %v351
      $region48: #{recon_forward.1} parent=39 // pred_fallthru
        _
      %p355 = scmp.lt.s32.totalorder %s20, 0
      %s356 = scalar_select %p355, %s20, 0
      %s357 = smul.addr %s356, 2
      %s358 = scalar_lea.vmem %s5, %s357
      // Predicated region
      $region49: #{recon_forward.1} parent=39 // pred_check
        %p359 = pneg %p158
      $region50: #{recon_forward.1} parent=39 // pred_check_branch
        %361 = sbr.rel (%p359) target = $region52
      $region51: #{recon_forward.1} parent=39 // pred_region
        _
      $region52: #{recon_forward.1} parent=39 // pred_fallthru
        _
      // Predicated region
      $region53: #{recon_forward.1} parent=39 // pred_check
        %p362 = pneg %p158
      $region54: #{recon_forward.1} parent=39 // pred_check_branch
        %364 = sbr.rel (%p362) target = $region56
      $region55: #{recon_forward.1} parent=39 // pred_region
        %p365 = scmp.lt.s32.totalorder %s20, 0
        %s366 = scalar_select %p365, %s20, 0
        %s367 = smul.addr %s366, 2
        %s368 = scalar_lea.vmem %s5, %s367
      $region56: #{recon_forward.1} parent=39 // pred_fallthru
        _
    $region40: #{recon_forward.1} parent=5 // pred_fallthru
      _
    %p369 = scmp.le.s32.totalorder 2, %s11
    // Predicated region
    $region57: #{recon_forward.1} parent=5 // pred_check
      %p370 = pneg %p369
    $region58: #{recon_forward.1} parent=5 // pred_check_branch
      %372 = sbr.rel (%p370) target = $region60
    $region59: #{recon_forward.1} parent=5 // pred_region
      %s373 = ssub.s32 %s11, 2
    $region60: #{recon_forward.1} parent=5 // pred_fallthru
      _
  $region6: #{recon_forward.1} parent=0 // loop_footer
    %s15 = sadd.s32 1, %s11
  $region7: #{recon_forward.1} parent=0 // loop_footer_branch
    %10 = sbr.rel target = $region3
  $region8: #{recon_forward.1} parent=0 // loop_exit
    _

</llo_original>
